<compile_context>
chip_gen: v7x
topology: tpu7x:2x2x1
jax: 0.10.0
libtpu: 0.0.40
codegen_flags: <defaults>
</compile_context>

<pallas_src>
import math

import jax
import jax.numpy as jnp
from jax import lax
from jax.experimental import pallas as pl
from jax.experimental.pallas import tpu as pltpu

_ACT_DTYPE = jnp.bfloat16  # inter-layer activation / weight dtype (MXU fast path)


# ----------------------------------------------------------------------------
# In-kernel helpers
# ----------------------------------------------------------------------------
def _silu(x):
    # SiLU in f32. exp and the approx reciprocal both run on the EUP slot,
    # keeping VALU slots free for the rest of the epilogue. The exp argument is
    # clamped so the denominator stays finite for very negative x.
    z = jnp.exp(jnp.minimum(-x, 80.0))
    return x * pl.reciprocal(1.0 + z, approx=True)


def _compiler_params(block_bytes):
    # Scoped-VMEM limit sized from the actual per-step buffers (double
    # buffered) plus slack, capped below v7x's 64 MiB physical VMEM.
    limit = int(2 * block_bytes) + (8 << 20)
    limit = max(32 << 20, min(limit, 64 << 20))
    return pltpu.CompilerParams(dimension_semantics=("parallel",),
                                vmem_limit_bytes=limit)


def _pick_tile_n(n, hw, target_lanes=2048, min_steps=2):
    """Whole images per lane block (3x3 shifts never cross a block boundary);
    aim for >= min_steps grid steps and <= ~target_lanes lanes per block."""
    tile_n = max(1, min(n, max(1, target_lanes // hw)))
    while tile_n > 1 and -(-n // tile_n) < min_steps:
        tile_n -= 1
    return tile_n


# ----------------------------------------------------------------------------
# Kernel 1: CSP head — cv1 (Conv+BN+SiLU) and bypass cv2 (+CSP-bn half +SiLU)
# read x once, write two (c_, M) outputs.
# ----------------------------------------------------------------------------
def _dual_pw_kernel(x_ref, w1_ref, b1_ref, w2_ref, b2_ref, t_ref, z2_ref):
    x = x_ref[...]                                                  # bf16 (c1, tm)
    y1 = jnp.dot(w1_ref[...], x, preferred_element_type=jnp.float32) + b1_ref[...]
    t_ref[...] = _silu(y1).astype(t_ref.dtype)
    y2 = jnp.dot(w2_ref[...], x, preferred_element_type=jnp.float32) + b2_ref[...]
    z2_ref[...] = _silu(y2).astype(z2_ref.dtype)


def _dual_pointwise(x_cm, w1, b1, w2, b2, tile_m):
    c1, M = x_cm.shape
    c_ = w1.shape[0]
    grid = (pl.cdiv(M, tile_m),)
    blk = (c1 * 2 + 2 * c_ * 2 + 2 * c_ * 4) * tile_m + 2 * c_ * c1 * 2 + 2 * c_ * 4
    return pl.pallas_call(
        _dual_pw_kernel,
        out_shape=(jax.ShapeDtypeStruct((c_, M), _ACT_DTYPE),
                   jax.ShapeDtypeStruct((c_, M), _ACT_DTYPE)),
        grid=grid,
        in_specs=[
            pl.BlockSpec((c1, tile_m), lambda i: (0, i)),
            pl.BlockSpec((c_, c1), lambda i: (0, 0)),
            pl.BlockSpec((c_, 1), lambda i: (0, 0)),
            pl.BlockSpec((c_, c1), lambda i: (0, 0)),
            pl.BlockSpec((c_, 1), lambda i: (0, 0)),
        ],
        out_specs=(pl.BlockSpec((c_, tile_m), lambda i: (0, i)),
                   pl.BlockSpec((c_, tile_m), lambda i: (0, i))),
        compiler_params=_compiler_params(blk),
    )(x_cm, w1, b1, w2, b2)


# ----------------------------------------------------------------------------
# Kernel 2: one Bottleneck block — 1x1 conv+BN+SiLU, 3x3 conv (9 shifted
# matmuls, no im2col) + BN + SiLU, optional shortcut add — all in VMEM.
# ----------------------------------------------------------------------------
def _make_bottleneck_kernel(H, W, add):
    def kernel(t_ref, w1_ref, b1_ref, w2_ref, b2_ref, o_ref):
        t_in = t_ref[...]                                           # bf16 (c_, tm)
        c_out = o_ref.shape[0]
        tm = t_ref.shape[1]

        # Bottleneck.cv1: 1x1 conv + folded BN + SiLU (stays in VMEM, f32).
        h = jnp.dot(w1_ref[...], t_in, preferred_element_type=jnp.float32)
        h = _silu(h + b1_ref[...])

        # Lane positions along the flattened (n, h, w) axis. Blocks hold whole
        # images, so every cross-row / cross-image / wrapped lane produced by a
        # shift is zeroed by the edge masks below (exact 3x3 pad=1 semantics).
        idx = lax.broadcasted_iota(jnp.int32, (1, tm), 1)
        wpos = idx % W
        hpos = (idx // W) % H

        # Bottleneck.cv2: 3x3 / stride 1 / pad 1 conv as 9 shifted matmuls.
        acc = jnp.zeros((c_out, tm), jnp.float32)
        for kh in range(3):
            for kw in range(3):
                dh, dw = kh - 1, kw - 1
                s = dh * W + dw
                hs = h if s == 0 else jnp.roll(h, -s, axis=1)
                if s != 0:
                    conds = []
                    if dh > 0:
                        conds.append(hpos < H - dh)
                    elif dh < 0:
                        conds.append(hpos >= -dh)
                    if dw > 0:
                        conds.append(wpos < W - dw)
                    elif dw < 0:
                        conds.append(wpos >= -dw)
                    valid = conds[0]
                    for c in conds[1:]:
                        valid = valid & c
                    hs = jnp.where(valid, hs, 0.0)
                acc = acc + jnp.dot(w2_ref[kh * 3 + kw], hs.astype(jnp.bfloat16),
                                    preferred_element_type=jnp.float32)

        y = _silu(acc + b2_ref[...])
        if add:
            y = y + t_in.astype(jnp.float32)
        o_ref[...] = y.astype(o_ref.dtype)

    return kernel


def _bottleneck_block(t, w1, b1, w2_taps, b2, H, W, tile_m, add):
    c_, M = t.shape
    grid = (pl.cdiv(M, tile_m),)
    blk = (2 * c_ * 2 + 4 * c_ * 4) * tile_m + 10 * c_ * c_ * 2 + 2 * c_ * 4
    return pl.pallas_call(
        _make_bottleneck_kernel(H, W, add),
        out_shape=jax.ShapeDtypeStruct((c_, M), _ACT_DTYPE),
        grid=grid,
        in_specs=[
            pl.BlockSpec((c_, tile_m), lambda i: (0, i)),
            pl.BlockSpec((c_, c_), lambda i: (0, 0)),
            pl.BlockSpec((c_, 1), lambda i: (0, 0)),
            pl.BlockSpec((9, c_, c_), lambda i: (0, 0, 0)),
            pl.BlockSpec((c_, 1), lambda i: (0, 0)),
        ],
        out_specs=pl.BlockSpec((c_, tile_m), lambda i: (0, i)),
        compiler_params=_compiler_params(blk),
    )(t, w1, b1, w2_taps, b2)


# ----------------------------------------------------------------------------
# Kernel 3: CSP tail — cv3, CSP-bn first half + SiLU, cv4 (+BN+SiLU) with the
# concat expressed as a split weight (no torch.cat materialization).
# ----------------------------------------------------------------------------
def _csp_tail_kernel(t_ref, z2_ref, w3_ref, b3_ref, w4a_ref, w4b_ref, b4_ref, o_ref):
    z1 = _silu(jnp.dot(w3_ref[...], t_ref[...],
                       preferred_element_type=jnp.float32) + b3_ref[...])
    z1 = z1.astype(jnp.bfloat16)
    o = jnp.dot(w4a_ref[...], z1, preferred_element_type=jnp.float32)
    o = o + jnp.dot(w4b_ref[...], z2_ref[...], preferred_element_type=jnp.float32)
    o_ref[...] = _silu(o + b4_ref[...]).astype(o_ref.dtype)


def _csp_tail(t, z2, w3, b3, w4a, w4b, b4, tile_m, out_dtype):
    c_, M = t.shape
    c2 = w4a.shape[0]
    grid = (pl.cdiv(M, tile_m),)
    blk = (2 * c_ * 2 + 2 * c_ * 4 + 2 * c2 * 4) * tile_m \
        + (c_ * c_ + 2 * c2 * c_) * 2 + (c_ + c2) * 4
    return pl.pallas_call(
        _csp_tail_kernel,
        out_shape=jax.ShapeDtypeStruct((c2, M), out_dtype),
        grid=grid,
        in_specs=[
            pl.BlockSpec((c_, tile_m), lambda i: (0, i)),
            pl.BlockSpec((c_, tile_m), lambda i: (0, i)),
            pl.BlockSpec((c_, c_), lambda i: (0, 0)),
            pl.BlockSpec((c_, 1), lambda i: (0, 0)),
            pl.BlockSpec((c2, c_), lambda i: (0, 0)),
            pl.BlockSpec((c2, c_), lambda i: (0, 0)),
            pl.BlockSpec((c2, 1), lambda i: (0, 0)),
        ],
        out_specs=pl.BlockSpec((c2, tile_m), lambda i: (0, i)),
        compiler_params=_compiler_params(blk),
    )(t, z2, w3, b3, w4a, w4b, b4)


# ----------------------------------------------------------------------------
# BottleneckCSP forward (Pallas)
# ----------------------------------------------------------------------------
def bottleneck_csp_pallas(x_nchw, p, *, shortcut=True):
    N, c1, H, W = x_nchw.shape
    HW = H * W
    M = N * HW
    c_, c2 = p["c_"], p["c2"]

    # Whole images per lane block so the in-kernel 3x3 shifts never cross a
    # block boundary; >= 2 blocks so megacore / pipelining can engage.
    # TODO(synk): very large H*W (> ~8k lanes) would need spatial tiling with a
    #             one-row halo instead of whole-image blocks.
    tile_n = _pick_tile_n(N, HW)
    tile_m = tile_n * HW

    x_cm = jnp.transpose(x_nchw, (1, 0, 2, 3)).reshape(c1, M).astype(_ACT_DTYPE)

    def col(v):
        return jnp.reshape(v, (-1, 1)).astype(jnp.float32)

    # Split the CSP BatchNorm (applied to cat(y1, y2)) into its two halves.
    s_a, s_b = p["bn_s"][:c_], p["bn_s"][c_:]
    b_a, b_b = p["bn_b"][:c_], p["bn_b"][c_:]

    # Head: cv1 (Conv+BN+SiLU) and cv2 bypass (conv, with the CSP bn second
    # half + SiLU folded forward) in one kernel reading x once.
    w_cv1 = (p["cv1_w"][:, :, 0, 0] * p["cv1_bn_s"][:, None]).astype(_ACT_DTYPE)
    w_cv2 = (p["cv2_w"][:, :, 0, 0] * s_b[:, None]).astype(_ACT_DTYPE)
    t, z2 = _dual_pointwise(x_cm, w_cv1, col(p["cv1_bn_b"]),
                            w_cv2, col(b_b), tile_m)

    # Bottleneck chain: fused 1x1 + 3x3 + shortcut per block.
    # TODO(synk): grouped 3x3 conv (g > 1) is not implemented; module default g=1.
    for bp in p["blocks"]:
        wb1 = (bp["cv1_w"][:, :, 0, 0] * bp["cv1_bn_s"][:, None]).astype(_ACT_DTYPE)
        wb2 = bp["cv2_w"] * bp["cv2_bn_s"][:, None, None, None]
        wb2 = jnp.transpose(wb2, (2, 3, 0, 1)).reshape(9, c_, c_).astype(_ACT_DTYPE)
        t = _bottleneck_block(t, wb1, col(bp["cv1_bn_b"]), wb2, col(bp["cv2_bn_b"]),
                              H, W, tile_m, add=shortcut)

    # Tail: cv3 + CSP-bn first half + SiLU + cv4(+BN+SiLU); cat == split weight.
    w_cv3 = (p["cv3_w"][:, :, 0, 0] * s_a[:, None]).astype(_ACT_DTYPE)
    w4 = p["cv4_w"][:, :, 0, 0] * p["cv4_bn_s"][:, None]
    out = _csp_tail(t, z2, w_cv3, col(b_a),
                    w4[:, :c_].astype(_ACT_DTYPE), w4[:, c_:].astype(_ACT_DTYPE),
                    col(p["cv4_bn_b"]), tile_m, out_dtype=x_nchw.dtype)

    return jnp.transpose(out.reshape(c2, N, H, W), (1, 0, 2, 3))


# ----------------------------------------------------------------------------
# Parameters (BatchNorm folded to eval-mode scale/bias) and pure-JAX reference
# ----------------------------------------------------------------------------
def make_params(key, c1, c2, n=1, e=0.5):
    c_ = int(c2 * e)

    def conv_w(k, cout, cin, ks):
        return (jax.random.normal(k, (cout, cin, ks, ks), jnp.float32)
                / math.sqrt(cin * ks * ks))

    def bn_fold(k, c, eps=1e-5):
        k1, k2, k3, k4 = jax.random.split(k, 4)
        gamma = 1.0 + 0.1 * jax.random.normal(k1, (c,), jnp.float32)
        beta = 0.1 * jax.random.normal(k2, (c,), jnp.float32)
        mean = 0.1 * jax.random.normal(k3, (c,), jnp.float32)
        var = 1.0 + 0.1 * jnp.abs(jax.random.normal(k4, (c,), jnp.float32))
        s = gamma / jnp.sqrt(var + eps)
        return s, beta - mean * s

    keys = jax.random.split(key, 7 + n)
    p = {"c_": c_, "c2": c2}
    p["cv1_w"] = conv_w(keys[0], c_, c1, 1)
    p["cv1_bn_s"], p["cv1_bn_b"] = bn_fold(keys[1], c_)
    p["cv2_w"] = conv_w(keys[2], c_, c1, 1)
    p["cv3_w"] = conv_w(keys[3], c_, c_, 1)
    p["cv4_w"] = conv_w(keys[4], c2, 2 * c_, 1)
    p["cv4_bn_s"], p["cv4_bn_b"] = bn_fold(keys[5], c2)
    p["bn_s"], p["bn_b"] = bn_fold(keys[6], 2 * c_)
    blocks = []
    for i in range(n):
        kb = jax.random.split(keys[7 + i], 4)
        bp = {"cv1_w": conv_w(kb[0], c_, c_, 1)}
        bp["cv1_bn_s"], bp["cv1_bn_b"] = bn_fold(kb[1], c_)
        bp["cv2_w"] = conv_w(kb[2], c_, c_, 3)
        bp["cv2_bn_s"], bp["cv2_bn_b"] = bn_fold(kb[3], c_)
        blocks.append(bp)
    p["blocks"] = blocks
    return p


def _ref_conv(x, w, pad=0):
    return lax.conv_general_dilated(
        x, w, window_strides=(1, 1), padding=[(pad, pad), (pad, pad)],
        dimension_numbers=("NCHW", "OIHW", "NCHW"))


def _ref_bn(x, s, b):
    return x * s[None, :, None, None] + b[None, :, None, None]


def bottleneck_csp_ref(x, p, shortcut=True):
    silu = jax.nn.silu
    t = silu(_ref_bn(_ref_conv(x, p["cv1_w"]), p["cv1_bn_s"], p["cv1_bn_b"]))
    for bp in p["blocks"]:
        h = silu(_ref_bn(_ref_conv(t, bp["cv1_w"]), bp["cv1_bn_s"], bp["cv1_bn_b"]))
        h = silu(_ref_bn(_ref_conv(h, bp["cv2_w"], pad=1), bp["cv2_bn_s"], bp["cv2_bn_b"]))
        t = t + h if shortcut else h
    y1 = _ref_conv(t, p["cv3_w"])
    y2 = _ref_conv(x, p["cv2_w"])
    z = silu(_ref_bn(jnp.concatenate([y1, y2], axis=1), p["bn_s"], p["bn_b"]))
    return silu(_ref_bn(_ref_conv(z, p["cv4_w"]), p["cv4_bn_s"], p["cv4_bn_b"]))


# ----------------------------------------------------------------------------
if __name__ == "__main__":
    key = jax.random.PRNGKey(0)
    kx, kp = jax.random.split(key)

    # Small BottleneckCSP(c1=8, c2=8, n=1, shortcut=True, g=1, e=0.5)
    N, C1, C2, H, W = 2, 8, 8, 16, 16
    x = jax.random.normal(kx, (N, C1, H, W), jnp.float32)
    params = make_params(kp, C1, C2, n=1, e=0.5)

    y = jax.block_until_ready(bottleneck_csp_pallas(x, params, shortcut=True))
    y_ref = bottleneck_csp_ref(x, params, shortcut=True)

    assert y.shape == (N, C2, H, W), y.shape
    assert y.dtype == x.dtype
    max_err = float(jnp.max(jnp.abs(y - y_ref)))
    # bf16 MXU path vs. f32 reference
    assert jnp.allclose(y, y_ref, atol=3e-2, rtol=3e-2), f"max abs err={max_err}"
    print("KERNEL_OK")
</pallas_src>

<mosaic_0001>
module attributes {stable_mosaic.version = 11 : i64} {
  func.func @_dual_pw_kernel(%arg0: i32, %arg1: memref<8x256xbf16, #tpu.memory_space<vmem>>, %arg2: memref<4x8xbf16, #tpu.memory_space<vmem>>, %arg3: memref<4x1xf32, #tpu.memory_space<vmem>>, %arg4: memref<4x8xbf16, #tpu.memory_space<vmem>>, %arg5: memref<4x1xf32, #tpu.memory_space<vmem>>, %arg6: memref<4x256xbf16, #tpu.memory_space<vmem>>, %arg7: memref<4x256xbf16, #tpu.memory_space<vmem>>) attributes {dimension_semantics = [#tpu.dimension_semantics<parallel>], iteration_bounds = array<i64: 2>, scalar_prefetch = 0 : i64, scratch_operands = 0 : i64, tpu.core_type = #tpu.core_type<tc>, window_params = [{transform_indices = @transform_0, window_bounds = array<i64: 8, 256>}, {pipeline_mode = #tpu.pipeline_mode<synchronous>, transform_indices = @transform_1, window_bounds = array<i64: 4, 8>}, {pipeline_mode = #tpu.pipeline_mode<synchronous>, transform_indices = @transform_2, window_bounds = array<i64: 4, 1>}, {pipeline_mode = #tpu.pipeline_mode<synchronous>, transform_indices = @transform_3, window_bounds = array<i64: 4, 8>}, {pipeline_mode = #tpu.pipeline_mode<synchronous>, transform_indices = @transform_4, window_bounds = array<i64: 4, 1>}, {transform_indices = @transform_5, window_bounds = array<i64: 4, 256>}, {transform_indices = @transform_6, window_bounds = array<i64: 4, 256>}]} {
    %c0 = arith.constant 0 : index
    %c0_0 = arith.constant 0 : index
    %0 = vector.load %arg1[%c0, %c0_0] : memref<8x256xbf16, #tpu.memory_space<vmem>>, vector<8x256xbf16>
    %c0_1 = arith.constant 0 : index
    %c0_2 = arith.constant 0 : index
    %1 = vector.load %arg2[%c0_1, %c0_2] : memref<4x8xbf16, #tpu.memory_space<vmem>>, vector<4x8xbf16>
    %cst = arith.constant dense<0.000000e+00> : vector<4x256xf32>
    %2 = tpu.matmul %1, %0, %cst {dimension_numbers = #tpu.dot_dimension_numbers<[1], [0], [0], [1], [0, 0, 1, 1], [], []>} : vector<4x8xbf16>, vector<8x256xbf16>, vector<4x256xf32> -> vector<4x256xf32>
    %c0_3 = arith.constant 0 : index
    %c0_4 = arith.constant 0 : index
    %3 = vector.load %arg3[%c0_3, %c0_4] : memref<4x1xf32, #tpu.memory_space<vmem>>, vector<4x1xf32>
    %4 = vector.broadcast %3 : vector<4x1xf32> to vector<4x256xf32>
    %5 = arith.addf %2, %4 : vector<4x256xf32>
    %cst_5 = arith.constant 0.000000e+00 : f32
    %6 = vector.broadcast %cst_5 : f32 to vector<4x256xf32>
    %7 = arith.subf %6, %5 : vector<4x256xf32>
    %cst_6 = arith.constant 8.000000e+01 : f32
    %8 = vector.broadcast %cst_6 : f32 to vector<4x256xf32>
    %9 = arith.minimumf %7, %8 : vector<4x256xf32>
    %10 = math.exp %9 : vector<4x256xf32>
    %cst_7 = arith.constant 1.000000e+00 : f32
    %11 = vector.broadcast %cst_7 : f32 to vector<4x256xf32>
    %12 = arith.addf %11, %10 : vector<4x256xf32>
    %13 = tpu.reciprocal %12 {approx = true} : vector<4x256xf32> -> vector<4x256xf32>
    %14 = arith.mulf %5, %13 : vector<4x256xf32>
    %15 = arith.truncf %14 : vector<4x256xf32> to vector<4x256xbf16>
    %c0_8 = arith.constant 0 : index
    %c0_9 = arith.constant 0 : index
    %16 = vector.load %arg6[%c0_8, %c0_9] : memref<4x256xbf16, #tpu.memory_space<vmem>>, vector<4x256xbf16>
    tpu.vector_store %arg6[%c0_8, %c0_9], %15 {strides = array<i32>} : memref<4x256xbf16, #tpu.memory_space<vmem>>, vector<4x256xbf16>,
    %c0_10 = arith.constant 0 : index
    %c0_11 = arith.constant 0 : index
    %17 = vector.load %arg4[%c0_10, %c0_11] : memref<4x8xbf16, #tpu.memory_space<vmem>>, vector<4x8xbf16>
    %cst_12 = arith.constant dense<0.000000e+00> : vector<4x256xf32>
    %18 = tpu.matmul %17, %0, %cst_12 {dimension_numbers = #tpu.dot_dimension_numbers<[1], [0], [0], [1], [0, 0, 1, 1], [], []>} : vector<4x8xbf16>, vector<8x256xbf16>, vector<4x256xf32> -> vector<4x256xf32>
    %c0_13 = arith.constant 0 : index
    %c0_14 = arith.constant 0 : index
    %19 = vector.load %arg5[%c0_13, %c0_14] : memref<4x1xf32, #tpu.memory_space<vmem>>, vector<4x1xf32>
    %20 = vector.broadcast %19 : vector<4x1xf32> to vector<4x256xf32>
    %21 = arith.addf %18, %20 : vector<4x256xf32>
    %cst_15 = arith.constant 0.000000e+00 : f32
    %22 = vector.broadcast %cst_15 : f32 to vector<4x256xf32>
    %23 = arith.subf %22, %21 : vector<4x256xf32>
    %cst_16 = arith.constant 8.000000e+01 : f32
    %24 = vector.broadcast %cst_16 : f32 to vector<4x256xf32>
    %25 = arith.minimumf %23, %24 : vector<4x256xf32>
    %26 = math.exp %25 : vector<4x256xf32>
    %cst_17 = arith.constant 1.000000e+00 : f32
    %27 = vector.broadcast %cst_17 : f32 to vector<4x256xf32>
    %28 = arith.addf %27, %26 : vector<4x256xf32>
    %29 = tpu.reciprocal %28 {approx = true} : vector<4x256xf32> -> vector<4x256xf32>
    %30 = arith.mulf %21, %29 : vector<4x256xf32>
    %31 = arith.truncf %30 : vector<4x256xf32> to vector<4x256xbf16>
    %c0_18 = arith.constant 0 : index
    %c0_19 = arith.constant 0 : index
    %32 = vector.load %arg7[%c0_18, %c0_19] : memref<4x256xbf16, #tpu.memory_space<vmem>>, vector<4x256xbf16>
    tpu.vector_store %arg7[%c0_18, %c0_19], %31 {strides = array<i32>} : memref<4x256xbf16, #tpu.memory_space<vmem>>, vector<4x256xbf16>,
    return
  }
  func.func @transform_0(%arg0: i32) -> (i32, i32) {
    %c0_i32 = arith.constant 0 : i32
    %c0_i32_0 = arith.constant 0 : i32
    return %c0_i32, %arg0 : i32, i32
  }
  func.func @transform_1(%arg0: i32) -> (i32, i32) {
    %c0_i32 = arith.constant 0 : i32
    %c0_i32_0 = arith.constant 0 : i32
    %c0_i32_1 = arith.constant 0 : i32
    return %c0_i32, %c0_i32_0 : i32, i32
  }
  func.func @transform_2(%arg0: i32) -> (i32, i32) {
    %c0_i32 = arith.constant 0 : i32
    %c0_i32_0 = arith.constant 0 : i32
    %c0_i32_1 = arith.constant 0 : i32
    return %c0_i32, %c0_i32_0 : i32, i32
  }
  func.func @transform_3(%arg0: i32) -> (i32, i32) {
    %c0_i32 = arith.constant 0 : i32
    %c0_i32_0 = arith.constant 0 : i32
    %c0_i32_1 = arith.constant 0 : i32
    return %c0_i32, %c0_i32_0 : i32, i32
  }
  func.func @transform_4(%arg0: i32) -> (i32, i32) {
    %c0_i32 = arith.constant 0 : i32
    %c0_i32_0 = arith.constant 0 : i32
    %c0_i32_1 = arith.constant 0 : i32
    return %c0_i32, %c0_i32_0 : i32, i32
  }
  func.func @transform_5(%arg0: i32) -> (i32, i32) {
    %c0_i32 = arith.constant 0 : i32
    %c0_i32_0 = arith.constant 0 : i32
    return %c0_i32, %arg0 : i32, i32
  }
  func.func @transform_6(%arg0: i32) -> (i32, i32) {
    %c0_i32 = arith.constant 0 : i32
    %c0_i32_0 = arith.constant 0 : i32
    return %c0_i32, %arg0 : i32, i32
  }
}

</mosaic_0001>

<llo_original>
// kernel: tpu_custom_call.1
$region0: #{tpu_custom_call.1}
  #allocation0 [shape = 'u32[]', space=smem, size = 0x4, offset = 0x4, fixed_abs, tag = 'smem constant byte address 0x4 - core index']
  #allocation1 [shape = 'u32[144,128]{1,0:T(1,128)}', space=vmem, size = 0x12000, scoped, tag = 'internal scratch']
  %s0 = inlined_call_operand.hbm [shape: bf16[8,512], index: 0, kind: input, shape index: {}]
  %s1 = inlined_call_operand.vmem [shape: bf16[4,8], index: 1, kind: input, shape index: {}]
  %s2 = inlined_call_operand.vmem [shape: f32[4,1], index: 2, kind: input, shape index: {}]
  %s3 = inlined_call_operand.vmem [shape: bf16[4,8], index: 3, kind: input, shape index: {}]
  %s4 = inlined_call_operand.vmem [shape: f32[4,1], index: 4, kind: input, shape index: {}]
  %s5 = inlined_call_operand.hbm [shape: bf16[4,512], index: 5, kind: output, shape index: {0}]
  %s6 = inlined_call_operand.hbm [shape: bf16[4,512], index: 6, kind: output, shape index: {1}]
  %7 = xla_tuple %s5, %s6
  %s8 = sld [smem:[#allocation0]]
  $region65: #{tpu_custom_call.1} parent=0
    _
  %s10 = ssub.s32 1, %s8
  %s11 = scalar_select 0, %s10, %s8
  $region1: #{tpu_custom_call.1} parent=0
    #allocation2 [shape = 'u8[8192]{0}', space=vmem, size = 0x2000, scoped, tag = 'input window, operand 0']
    #allocation3 [shape = 's32[2]{0}', space=sflag, size = 0x8, scoped, tag = 'scoped memory for tpu_custom_call.1']
    #allocation4 [shape = 's32[2]{0}', space=sflag, size = 0x8, scoped, tag = 'scoped memory for tpu_custom_call.1']
    #allocation5 [shape = 'u8[4096]{0}', space=vmem, size = 0x1000, scoped, tag = 'output window, operand 0']
    #allocation6 [shape = 'u8[4096]{0}', space=vmem, size = 0x1000, scoped, tag = 'output window, operand 1']
    #allocation7 [shape = 's32[2]{0}', space=sflag, size = 0x8, scoped, tag = 'scoped memory for tpu_custom_call.1']
    %12 = vsyncpa [#allocation3], 0
    %s13 = scalar_lea.sflag [#allocation3], 1
    %14 = vsyncpa %s13, 0
    %15 = vsyncpa [#allocation4], 0
    %s16 = scalar_lea.sflag [#allocation4], 1
    %17 = vsyncpa %s16, 0
    %18 = vsyncpa [#allocation7], 0
    %s19 = scalar_lea.sflag [#allocation7], 1
    %20 = vsyncpa %s19, 0
    loop: start=0, step=1, limit=4
    $region2: #{tpu_custom_call.1} parent=1 // loop_pre_header
      _
    $region3: #{tpu_custom_call.1} parent=1 // loop_header
      %s22 = sphi 0, %s26
      %p23 = scmp.ge.s32.totalorder %s22, 4
      %s32 = sphi 0, %s34
      %s35 = sphi 0, %s32
      %s36 = sphi 0, %s35
      %s52 = sphi 0, %s36
      %s56 = sphi 0, %s56
      %s58 = sphi 0, %s56
      %s59 = sphi 0, %s58
      %s73 = sphi 0, %s59
      %s77 = sphi 0, %s77
      %s79 = sphi 0, %s77
      %s80 = sphi 0, %s79
      %s94 = sphi 0, %s80
      %s98 = sphi 0, %s98
      %s100 = sphi 0, %s98
      %s101 = sphi 0, %s100
      %s115 = sphi 0, %s101
      %s119 = sphi 0, %s119
      %s121 = sphi 0, %s119
      %s122 = sphi 0, %s121
      %s136 = sphi 0, %s122
      %s142 = sphi 0, %s144
      %s145 = sphi 0, %s142
      %s146 = sphi 0, %s145
      %s162 = sphi 0, %s146
      %s168 = sphi 0, %s170
      %s171 = sphi 0, %s168
      %s172 = sphi 0, %s171
      %s188 = sphi 0, %s172
    $region4: #{tpu_custom_call.1} parent=1 // loop_header_branch
      %25 = sbr.rel (%p23) target = $region8
    $region5: #{tpu_custom_call.1} parent=1 // loop_body
      %s27 = ssub.s32 %s22, 1
      %s28 = ssub.s32 %s22, 2
      %s29 = sadd.s32 %s22, 1
      %s30 = ssub.s32 %s22, %s29
      %p31 = scmp.eq.s32.totalorder %s30, 0
      %s33 = sadd.s32 %s32, 1
      %s34 = scalar_select %p31, %s32, %s33
      %p37 = pneg %p31
      %p38 = scmp.eq.s32.totalorder %s22, 1
      %p39 = por %p37, %p38
      %p40 = scmp.ne.s32.totalorder %s32, %s35
      %p41 = scmp.eq.s32.totalorder %s22, 0
      %p42 = por %p40, %p41
      %p43 = scmp.ne.s32.totalorder %s32, %s35
      %p44 = scmp.eq.s32.totalorder %s27, 1
      %p45 = por %p43, %p44
      %p46 = scmp.ne.s32.totalorder %s35, %s36
      %p47 = scmp.eq.s32.totalorder %s27, 0
      %p48 = por %p46, %p47
      %p49 = scmp.ne.s32.totalorder %s35, %s36
      %p50 = scmp.eq.s32.totalorder %s28, 1
      %p51 = por %p49, %p50
      %p53 = scmp.ne.s32.totalorder %s36, %s52
      %p54 = scmp.eq.s32.totalorder %s28, 0
      %p55 = por %p53, %p54
      %s57 = sadd.s32 %s56, 1
      %p60 = scmp.eq.s32.totalorder %s22, 1
      %p61 = scmp.ne.s32.totalorder %s56, %s58
      %p62 = scmp.eq.s32.totalorder %s22, 0
      %p63 = por %p61, %p62
      %p64 = scmp.ne.s32.totalorder %s56, %s58
      %p65 = scmp.eq.s32.totalorder %s27, 1
      %p66 = por %p64, %p65
      %p67 = scmp.ne.s32.totalorder %s58, %s59
      %p68 = scmp.eq.s32.totalorder %s27, 0
      %p69 = por %p67, %p68
      %p70 = scmp.ne.s32.totalorder %s58, %s59
      %p71 = scmp.eq.s32.totalorder %s28, 1
      %p72 = por %p70, %p71
      %p74 = scmp.ne.s32.totalorder %s59, %s73
      %p75 = scmp.eq.s32.totalorder %s28, 0
      %p76 = por %p74, %p75
      %s78 = sadd.s32 %s77, 1
      %p81 = scmp.eq.s32.totalorder %s22, 1
      %p82 = scmp.ne.s32.totalorder %s77, %s79
      %p83 = scmp.eq.s32.totalorder %s22, 0
      %p84 = por %p82, %p83
      %p85 = scmp.ne.s32.totalorder %s77, %s79
      %p86 = scmp.eq.s32.totalorder %s27, 1
      %p87 = por %p85, %p86
      %p88 = scmp.ne.s32.totalorder %s79, %s80
      %p89 = scmp.eq.s32.totalorder %s27, 0
      %p90 = por %p88, %p89
      %p91 = scmp.ne.s32.totalorder %s79, %s80
      %p92 = scmp.eq.s32.totalorder %s28, 1
      %p93 = por %p91, %p92
      %p95 = scmp.ne.s32.totalorder %s80, %s94
      %p96 = scmp.eq.s32.totalorder %s28, 0
      %p97 = por %p95, %p96
      %s99 = sadd.s32 %s98, 1
      %p102 = scmp.eq.s32.totalorder %s22, 1
      %p103 = scmp.ne.s32.totalorder %s98, %s100
      %p104 = scmp.eq.s32.totalorder %s22, 0
      %p105 = por %p103, %p104
      %p106 = scmp.ne.s32.totalorder %s98, %s100
      %p107 = scmp.eq.s32.totalorder %s27, 1
      %p108 = por %p106, %p107
      %p109 = scmp.ne.s32.totalorder %s100, %s101
      %p110 = scmp.eq.s32.totalorder %s27, 0
      %p111 = por %p109, %p110
      %p112 = scmp.ne.s32.totalorder %s100, %s101
      %p113 = scmp.eq.s32.totalorder %s28, 1
      %p114 = por %p112, %p113
      %p116 = scmp.ne.s32.totalorder %s101, %s115
      %p117 = scmp.eq.s32.totalorder %s28, 0
      %p118 = por %p116, %p117
      %s120 = sadd.s32 %s119, 1
      %p123 = scmp.eq.s32.totalorder %s22, 1
      %p124 = scmp.ne.s32.totalorder %s119, %s121
      %p125 = scmp.eq.s32.totalorder %s22, 0
      %p126 = por %p124, %p125
      %p127 = scmp.ne.s32.totalorder %s119, %s121
      %p128 = scmp.eq.s32.totalorder %s27, 1
      %p129 = por %p127, %p128
      %p130 = scmp.ne.s32.totalorder %s121, %s122
      %p131 = scmp.eq.s32.totalorder %s27, 0
      %p132 = por %p130, %p131
      %p133 = scmp.ne.s32.totalorder %s121, %s122
      %p134 = scmp.eq.s32.totalorder %s28, 1
      %p135 = por %p133, %p134
      %p137 = scmp.ne.s32.totalorder %s122, %s136
      %p138 = scmp.eq.s32.totalorder %s28, 0
      %p139 = por %p137, %p138
      %s140 = ssub.s32 %s22, %s29
      %p141 = scmp.eq.s32.totalorder %s140, 0
      %s143 = sadd.s32 %s142, 1
      %s144 = scalar_select %p141, %s142, %s143
      %p147 = pneg %p141
      %p148 = scmp.eq.s32.totalorder %s22, 1
      %p149 = por %p147, %p148
      %p150 = scmp.ne.s32.totalorder %s142, %s145
      %p151 = scmp.eq.s32.totalorder %s22, 0
      %p152 = por %p150, %p151
      %p153 = scmp.ne.s32.totalorder %s142, %s145
      %p154 = scmp.eq.s32.totalorder %s27, 1
      %p155 = por %p153, %p154
      %p156 = scmp.ne.s32.totalorder %s145, %s146
      %p157 = scmp.eq.s32.totalorder %s27, 0
      %p158 = por %p156, %p157
      %p159 = scmp.ne.s32.totalorder %s145, %s146
      %p160 = scmp.eq.s32.totalorder %s28, 1
      %p161 = por %p159, %p160
      %p163 = scmp.ne.s32.totalorder %s146, %s162
      %p164 = scmp.eq.s32.totalorder %s28, 0
      %p165 = por %p163, %p164
      %s166 = ssub.s32 %s22, %s29
      %p167 = scmp.eq.s32.totalorder %s166, 0
      %s169 = sadd.s32 %s168, 1
      %s170 = scalar_select %p167, %s168, %s169
      %p173 = pneg %p167
      %p174 = scmp.eq.s32.totalorder %s22, 1
      %p175 = por %p173, %p174
      %p176 = scmp.ne.s32.totalorder %s168, %s171
      %p177 = scmp.eq.s32.totalorder %s22, 0
      %p178 = por %p176, %p177
      %p179 = scmp.ne.s32.totalorder %s168, %s171
      %p180 = scmp.eq.s32.totalorder %s27, 1
      %p181 = por %p179, %p180
      %p182 = scmp.ne.s32.totalorder %s171, %s172
      %p183 = scmp.eq.s32.totalorder %s27, 0
      %p184 = por %p182, %p183
      %p185 = scmp.ne.s32.totalorder %s171, %s172
      %p186 = scmp.eq.s32.totalorder %s28, 1
      %p187 = por %p185, %p186
      %p189 = scmp.ne.s32.totalorder %s172, %s188
      %p190 = scmp.eq.s32.totalorder %s28, 0
      %p191 = por %p189, %p190
      %p192 = scmp.le.s32.totalorder 1, %s22
      %p193 = scmp.lt.s32.totalorder %s22, 3
      %p194 = pnand %p192, %p193
      %p195 = pneg %p194
      // Predicated region
      $region9: #{tpu_custom_call.1} parent=5 // pred_check
        _
      $region10: #{tpu_custom_call.1} parent=5 // pred_check_branch
        %197 = sbr.rel (%p194) target = $region12
      $region11: #{tpu_custom_call.1} parent=5 // pred_region
        %s198 = ssub.s32 %s22, 1
        // Predicated region
        $region13: #{tpu_custom_call.1} parent=11 // pred_check
          %p199 = pneg %p69
        $region14: #{tpu_custom_call.1} parent=11 // pred_check_branch
          %201 = sbr.rel (%p199) target = $region16
        $region15: #{tpu_custom_call.1} parent=11 // pred_region
          _
        $region16: #{tpu_custom_call.1} parent=11 // pred_fallthru
          _
        // Predicated region
        $region17: #{tpu_custom_call.1} parent=11 // pred_check
          %p202 = pneg %p90
        $region18: #{tpu_custom_call.1} parent=11 // pred_check_branch
          %204 = sbr.rel (%p202) target = $region20
        $region19: #{tpu_custom_call.1} parent=11 // pred_region
          _
        $region20: #{tpu_custom_call.1} parent=11 // pred_fallthru
          _
        // Predicated region
        $region21: #{tpu_custom_call.1} parent=11 // pred_check
          %p205 = pneg %p111
        $region22: #{tpu_custom_call.1} parent=11 // pred_check_branch
          %207 = sbr.rel (%p205) target = $region24
        $region23: #{tpu_custom_call.1} parent=11 // pred_region
          _
        $region24: #{tpu_custom_call.1} parent=11 // pred_fallthru
          _
        // Predicated region
        $region25: #{tpu_custom_call.1} parent=11 // pred_check
          %p208 = pneg %p132
        $region26: #{tpu_custom_call.1} parent=11 // pred_check_branch
          %210 = sbr.rel (%p208) target = $region28
        $region27: #{tpu_custom_call.1} parent=11 // pred_region
          _
        $region28: #{tpu_custom_call.1} parent=11 // pred_fallthru
          _
      $region12: #{tpu_custom_call.1} parent=5 // pred_fallthru
        _
      %p211 = scmp.lt.s32.totalorder %s22, 2
      // Predicated region
      $region29: #{tpu_custom_call.1} parent=5 // pred_check
        %p212 = pneg %p211
      $region30: #{tpu_custom_call.1} parent=5 // pred_check_branch
        %214 = sbr.rel (%p212) target = $region32
      $region31: #{tpu_custom_call.1} parent=5 // pred_region
        // Predicated region
        $region33: #{tpu_custom_call.1} parent=31 // pred_check
          %p215 = pneg %p42
        $region34: #{tpu_custom_call.1} parent=31 // pred_check_branch
          %217 = sbr.rel (%p215) target = $region36
        $region35: #{tpu_custom_call.1} parent=31 // pred_region
          %s218 = sand.u32 %s32, 1
          %s219 = scalar_lea.sflag [#allocation3], %s218
          %s220 = sand.u32 %s32, 1
          %s221 = smul.addr %s220, 8
          %s222 = scalar_lea.vmem [#allocation2], %s221
          %s223 = smul.u32 2, %s22
          %s225 = ssub.s32 128, 128
          %226 = vsyncadd %s219, %s225
          %s227 = smul.addr %s223, 64
          %s228 = scalar_lea.hbm %s0, %s227
          %s230 = sshll.u32 %s222, 4
          %s231 = int_to_ptr.vmem [resolvable:$true] %s230
          %233 = dma.hbm_to_vmem [thread:$0]  %s228, 128, %s231, %s219
        $region36: #{tpu_custom_call.1} parent=31 // pred_fallthru
          _
      $region32: #{tpu_custom_call.1} parent=5 // pred_fallthru
        _
      %p234 = scmp.le.s32.totalorder 1, %s22
      %p235 = scmp.lt.s32.totalorder %s22, 3
      %p236 = pnand %p234, %p235
      %p237 = pneg %p236
      // Predicated region
      $region37: #{tpu_custom_call.1} parent=5 // pred_check
        _
      $region38: #{tpu_custom_call.1} parent=5 // pred_check_branch
        %239 = sbr.rel (%p236) target = $region40
      $region39: #{tpu_custom_call.1} parent=5 // pred_region
        %s240 = ssub.s32 %s22, 1
        %s241 = sand.u32 %s35, 1
        %s242 = scalar_lea.sflag [#allocation3], %s241
        %s243 = sand.u32 %s35, 1
        %s244 = smul.addr %s243, 8
        %s245 = scalar_lea.vmem [#allocation2], %s244
        // Predicated region
        $region41: #{tpu_custom_call.1} parent=39 // pred_check
          %p246 = pneg %p48
        $region42: #{tpu_custom_call.1} parent=39 // pred_check_branch
          %248 = sbr.rel (%p246) target = $region44
        $region43: #{tpu_custom_call.1} parent=39 // pred_region
          %249 = dma.done %s242, 128
        $region44: #{tpu_custom_call.1} parent=39 // pred_fallthru
          _
        %s250 = sand.u32 %s35, 1
        %s251 = scalar_lea.sflag [#allocation3], %s250
        %s252 = sand.u32 %s35, 1
        %s253 = smul.addr %s252, 8
        %s254 = scalar_lea.vmem [#allocation2], %s253
        %p255 = pneg %p48
        %p256 = pneg %p45
        %p257 = pneg %p69
        %p258 = pneg %p66
        %p259 = pneg %p90
        %p260 = pneg %p87
        %p261 = pneg %p111
        %p262 = pneg %p108
        %p263 = pneg %p132
        %p264 = pneg %p129
        %p265 = pneg %p158
        %p266 = pneg %p155
        %s267 = sand.u32 %s145, 1
        %s268 = scalar_lea.sflag [#allocation4], %s267
        %s269 = sand.u32 %s145, 1
        %s270 = smul.addr %s269, 4
        %s271 = scalar_lea.vmem [#allocation5], %s270
        %p272 = pneg %p184
        %p273 = pneg %p181
        %s274 = sand.u32 %s171, 1
        %s275 = scalar_lea.sflag [#allocation7], %s274
        %s276 = sand.u32 %s171, 1
        %s277 = smul.addr %s276, 4
        %s278 = scalar_lea.vmem [#allocation6], %s277
        %s279 = smul.u32 2, %s27
        %s280 = smul.u32 2, %s27
        %s281 = smul.u32 2, %s27
        %v283 = vld [vmem:[%s245] sm:$0xff]
        %v284 = vld [vmem:[%s1] sm:$0x3]
        %v285 = vld [vmem:[%s2] sm:$0xf]
        %287 = vset.pattern.permute.xlu0 0
        %288 = vperm.xlu0 %287, %v285
        %v289 = vpop.permute.xlu0 %288
        %v292 = vunpack.c.l.b16 %v283
        %v293 = vunpack.c.h.b16 %v283
        %v294 = vpack.c.b16 %v292, %v292
        %v295 = vpack.c.b16 %v293, %v293
        %vm296 = vcmask 64512
        %v298 = vsel %vm296, %v284, 0
        %vm300 = vcmask 1043456
        %v302 = vsel %vm300, %v294, 0
        %v305 = vsel %vm300, %v295, 0
        %307 = vmatprep.subr.bf16.mxu0 %v305
        %308 = vmatpush1.bf16.msra.mxu0 %v302
        %309 = vmatprep.subr.bf16.mxu0 0
        %310 = vmatpush1.bf16.msra.mxu0 0
        %311 = vmatprep.subr.bf16.mxu0 0
        %312 = vmatpush1.bf16.msra.mxu0 0
        %313 = vmatprep.subr.bf16.mxu0 0
        %314 = vmatpush1.bf16.msra.mxu0 0
        %315 = vmatprep.subr.bf16.mxu0 0
        %316 = vmatpush1.bf16.msra.mxu0 0
        %317 = vmatprep.subr.bf16.mxu0 0
        %318 = vmatpush1.bf16.msra.mxu0 0
        %319 = vmatprep.subr.bf16.mxu0 0
        %320 = vmatpush1.bf16.msra.mxu0 0
        %321 = vmatprep.subr.bf16.mxu0 0
        %322 = vmatpush1.bf16.msra.mxu0 0
        %323 = vmatprep.subr.bf16.mxu0 0
        %324 = vmatpush1.bf16.msra.mxu0 0
        %325 = vmatprep.subr.bf16.mxu0 0
        %326 = vmatpush1.bf16.msra.mxu0 0
        %327 = vmatprep.subr.bf16.mxu0 0
        %328 = vmatpush1.bf16.msra.mxu0 0
        %329 = vmatprep.subr.bf16.mxu0 0
        %330 = vmatpush1.bf16.msra.mxu0 0
        %331 = vmatprep.subr.bf16.mxu0 0
        %332 = vmatpush1.bf16.msra.mxu0 0
        %333 = vmatprep.subr.bf16.mxu0 0
        %334 = vmatpush1.bf16.msra.mxu0 0
        %335 = vmatprep.subr.bf16.mxu0 0
        %336 = vmatpush1.bf16.msra.mxu0 0
        %337 = vmatprep.subr.bf16.mxu0 0
        %338 = vmatpush1.bf16.msra.mxu0 0
        %339 = vmatprep.mubr.bf16.mxu0 0
        %340 = vmatmul.mubr.bf16.gmra.mrb[0].mxu0 %v298
        %v341 = vpop.f32.mrb[0].mxu0
        %v342 = vadd.f32 %v289, %v341
        %v343 = vpop.f32.mrb[0].mxu0
        %v344 = vadd.f32 %v289, %v343
        %v345 = vpop.f32.mrb[0].mxu0
        %v346 = vpop.f32.mrb[0].mxu0
        %347 = vdwg.mxu0
        %v348 = vsub.f32 0.0, %v342
        %v349 = vsub.f32 0.0, %v344
        %v350 = vmin.f32 %v348, 80.0
        %v351 = vmin.f32 %v349, 80.0
        %v352 = vmul.f32 %v350, 1.442695
        %v353 = vpow.pop %v352
        %v354 = vmul.f32 %v351, 1.442695
        %v355 = vpow.pop %v354
        %v356 = vadd.f32 %v353, 1.0
        %v357 = vadd.f32 %v355, 1.0
        %v358 = vrcp.pop %v356
        %v359 = vrcp.pop %v357
        %v360 = vmul.f32 %v342, %v358
        %v361 = vmul.f32 %v344, %v359
        %v362 = vpack.c.bf16 %v360, %v360
        %v363 = vpack.c.bf16 %v361, %v361
        %v366 = vcombine.low %v362, %v363
        %v368 = vunpack.c.l.s4 1983009808
        %v369 = vunpack.c.0.s8 %v368
        %v370 = vlaneseq
        %v371 = vshrl.u32 %v370, 7
        %v372 = vsub.s32 %v369, %v371
        %v373 = vrot.slane %v366, %v372
        %375 = vst [vmem:[%s271] sm:$0xf] %v373
        %v376 = vld [vmem:[%s3] sm:$0x3]
        %v377 = vld [vmem:[%s4] sm:$0xf]
        %379 = vset.pattern.permute.xlu0 0
        %380 = vperm.xlu0 %379, %v377
        %v381 = vpop.permute.xlu0 %380
        %v384 = vsel %vm296, %v376, 0
        %386 = vmatprep.subr.bf16.mxu0 %v305
        %387 = vmatpush1.bf16.msra.mxu0 %v302
        %388 = vmatprep.subr.bf16.mxu0 0
        %389 = vmatpush1.bf16.msra.mxu0 0
        %390 = vmatprep.subr.bf16.mxu0 0
        %391 = vmatpush1.bf16.msra.mxu0 0
        %392 = vmatprep.subr.bf16.mxu0 0
        %393 = vmatpush1.bf16.msra.mxu0 0
        %394 = vmatprep.subr.bf16.mxu0 0
        %395 = vmatpush1.bf16.msra.mxu0 0
        %396 = vmatprep.subr.bf16.mxu0 0
        %397 = vmatpush1.bf16.msra.mxu0 0
        %398 = vmatprep.subr.bf16.mxu0 0
        %399 = vmatpush1.bf16.msra.mxu0 0
        %400 = vmatprep.subr.bf16.mxu0 0
        %401 = vmatpush1.bf16.msra.mxu0 0
        %402 = vmatprep.subr.bf16.mxu0 0
        %403 = vmatpush1.bf16.msra.mxu0 0
        %404 = vmatprep.subr.bf16.mxu0 0
        %405 = vmatpush1.bf16.msra.mxu0 0
        %406 = vmatprep.subr.bf16.mxu0 0
        %407 = vmatpush1.bf16.msra.mxu0 0
        %408 = vmatprep.subr.bf16.mxu0 0
        %409 = vmatpush1.bf16.msra.mxu0 0
        %410 = vmatprep.subr.bf16.mxu0 0
        %411 = vmatpush1.bf16.msra.mxu0 0
        %412 = vmatprep.subr.bf16.mxu0 0
        %413 = vmatpush1.bf16.msra.mxu0 0
        %414 = vmatprep.subr.bf16.mxu0 0
        %415 = vmatpush1.bf16.msra.mxu0 0
        %416 = vmatprep.subr.bf16.mxu0 0
        %417 = vmatpush1.bf16.msra.mxu0 0
        %418 = vmatprep.mubr.bf16.mxu0 0
        %419 = vmatmul.mubr.bf16.gmra.mrb[0].mxu0 %v384
        %v420 = vpop.f32.mrb[0].mxu0
        %v421 = vadd.f32 %v381, %v420
        %v422 = vpop.f32.mrb[0].mxu0
        %v423 = vadd.f32 %v381, %v422
        %v424 = vpop.f32.mrb[0].mxu0
        %v425 = vpop.f32.mrb[0].mxu0
        %426 = vdwg.mxu0
        %v427 = vsub.f32 0.0, %v421
        %v428 = vsub.f32 0.0, %v423
        %v429 = vmin.f32 %v427, 80.0
        %v430 = vmin.f32 %v428, 80.0
        %v431 = vmul.f32 %v429, 1.442695
        %v432 = vpow.pop %v431
        %v433 = vmul.f32 %v430, 1.442695
        %v434 = vpow.pop %v433
        %v435 = vadd.f32 %v432, 1.0
        %v436 = vadd.f32 %v434, 1.0
        %v437 = vrcp.pop %v435
        %v438 = vrcp.pop %v436
        %v439 = vmul.f32 %v421, %v437
        %v440 = vmul.f32 %v423, %v438
        %v441 = vpack.c.bf16 %v439, %v439
        %v442 = vpack.c.bf16 %v440, %v440
        %v445 = vcombine.low %v441, %v442
        %v447 = vunpack.c.l.s4 1983009808
        %v448 = vunpack.c.0.s8 %v447
        %v449 = vlaneseq
        %v450 = vshrl.u32 %v449, 7
        %v451 = vsub.s32 %v448, %v450
        %v452 = vrot.slane %v445, %v451
        %454 = vst [vmem:[%s278] sm:$0xf] %v452
        %s455 = sand.u32 %s145, 1
        %s456 = scalar_lea.sflag [#allocation4], %s455
        %s457 = sand.u32 %s145, 1
        %s458 = smul.addr %s457, 4
        %s459 = scalar_lea.vmem [#allocation5], %s458
        %s460 = sand.u32 %s171, 1
        %s461 = scalar_lea.sflag [#allocation7], %s460
        %s462 = sand.u32 %s171, 1
        %s463 = smul.addr %s462, 4
        %s464 = scalar_lea.vmem [#allocation6], %s463
        // Predicated region
        $region45: #{tpu_custom_call.1} parent=39 // pred_check
          %p465 = pneg %p155
        $region46: #{tpu_custom_call.1} parent=39 // pred_check_branch
          %467 = sbr.rel (%p465) target = $region48
        $region47: #{tpu_custom_call.1} parent=39 // pred_region
          %s468 = smul.u32 2, %s27
          %s470 = ssub.s32 64, 64
          %471 = vsyncadd %s456, %s470
          %s472 = smul.addr %s468, 32
          %s473 = scalar_lea.hbm %s5, %s472
          %s475 = sshll.u32 %s459, 4
          %s476 = int_to_ptr.vmem [resolvable:$true] %s475
          %478 = dma.vmem_to_hbm [thread:$0]  %s476, 64, %s473, %s456
        $region48: #{tpu_custom_call.1} parent=39 // pred_fallthru
          _
        // Predicated region
        $region49: #{tpu_custom_call.1} parent=39 // pred_check
          %p479 = pneg %p181
        $region50: #{tpu_custom_call.1} parent=39 // pred_check_branch
          %481 = sbr.rel (%p479) target = $region52
        $region51: #{tpu_custom_call.1} parent=39 // pred_region
          %s482 = smul.u32 2, %s27
          %s484 = ssub.s32 64, 64
          %485 = vsyncadd %s461, %s484
          %s486 = smul.addr %s482, 32
          %s487 = scalar_lea.hbm %s6, %s486
          %s489 = sshll.u32 %s464, 4
          %s490 = int_to_ptr.vmem [resolvable:$true] %s489
          %492 = dma.vmem_to_hbm [thread:$0]  %s490, 64, %s487, %s461
        $region52: #{tpu_custom_call.1} parent=39 // pred_fallthru
          _
      $region40: #{tpu_custom_call.1} parent=5 // pred_fallthru
        _
      %p493 = scmp.le.s32.totalorder 2, %s22
      // Predicated region
      $region53: #{tpu_custom_call.1} parent=5 // pred_check
        %p494 = pneg %p493
      $region54: #{tpu_custom_call.1} parent=5 // pred_check_branch
        %496 = sbr.rel (%p494) target = $region56
      $region55: #{tpu_custom_call.1} parent=5 // pred_region
        %s497 = ssub.s32 %s22, 2
        // Predicated region
        $region57: #{tpu_custom_call.1} parent=55 // pred_check
          %p498 = pneg %p161
        $region58: #{tpu_custom_call.1} parent=55 // pred_check_branch
          %500 = sbr.rel (%p498) target = $region60
        $region59: #{tpu_custom_call.1} parent=55 // pred_region
          %s501 = sand.u32 %s146, 1
          %s502 = scalar_lea.sflag [#allocation4], %s501
          %s503 = sand.u32 %s146, 1
          %s504 = smul.addr %s503, 4
          %s505 = scalar_lea.vmem [#allocation5], %s504
          %506 = dma.done %s502, 64
        $region60: #{tpu_custom_call.1} parent=55 // pred_fallthru
          _
        // Predicated region
        $region61: #{tpu_custom_call.1} parent=55 // pred_check
          %p507 = pneg %p187
        $region62: #{tpu_custom_call.1} parent=55 // pred_check_branch
          %509 = sbr.rel (%p507) target = $region64
        $region63: #{tpu_custom_call.1} parent=55 // pred_region
          %s510 = sand.u32 %s172, 1
          %s511 = scalar_lea.sflag [#allocation7], %s510
          %s512 = sand.u32 %s172, 1
          %s513 = smul.addr %s512, 4
          %s514 = scalar_lea.vmem [#allocation6], %s513
          %515 = dma.done %s511, 64
        $region64: #{tpu_custom_call.1} parent=55 // pred_fallthru
          _
      $region56: #{tpu_custom_call.1} parent=5 // pred_fallthru
        _
    $region6: #{tpu_custom_call.1} parent=1 // loop_footer
      %s26 = sadd.s32 1, %s22
    $region7: #{tpu_custom_call.1} parent=1 // loop_footer_branch
      %21 = sbr.rel target = $region3
    $region8: #{tpu_custom_call.1} parent=1 // loop_exit
      _
    %516 = vsyncpa [#allocation3], 1
    %s517 = scalar_lea.sflag [#allocation3], 1
    %518 = vsyncpa %s517, 1
    %519 = vsyncpa [#allocation4], 1
    %s520 = scalar_lea.sflag [#allocation4], 1
    %521 = vsyncpa %s520, 1
    %522 = vsyncpa [#allocation7], 1
    %s523 = scalar_lea.sflag [#allocation7], 1
    %524 = vsyncpa %s523, 1

</llo_original>
